<compile_context>
chip_gen: v7x
topology: tpu7x:2x2x1
jax: 0.10.0
libtpu: 0.0.40
codegen_flags: <defaults>
</compile_context>

<pallas_src>
import functools

import jax
import jax.numpy as jnp
from jax.experimental import pallas as pl
from jax.experimental.pallas import tpu as pltpu

_MIB = 1024 * 1024


def _chip_vmem_bytes():
    """Per-TensorCore VMEM capacity; conservative (v7x-sized) fallback."""
    try:
        info = pltpu.get_tpu_info()
        cap = int(getattr(info, "vmem_capacity_bytes", 0) or 0)
        if cap > 0:
            return cap
    except Exception:
        pass
    return 64 * _MIB


def _vmem_plan():
    """Returns (buffer_budget_bytes, scoped_vmem_limit_bytes) for this chip."""
    cap = _chip_vmem_bytes()
    # Leave ~16 MiB headroom for Mosaic internal scratch; cap the scoped limit
    # at 112 MiB on 128 MiB parts (v5e/v6e) and ~48 MiB on 64 MiB parts (v7x).
    limit = max(32 * _MIB, min(cap - 16 * _MIB, 112 * _MIB))
    budget = limit // 2
    return budget, limit


def _sublane_multiple(itemsize):
    # Sublane packing requirement: 8 rows for 4-byte, 16 for 2-byte, 32 for 1-byte.
    return max(8, 32 // int(itemsize))


def _pick_tile_rows(rows, width, itemsize, budget):
    """Largest row tile that keeps double-buffered IO + f32 temps in budget."""
    # Per element of a row tile:
    #   2x double-buffered input + 2x double-buffered output (itemsize each)
    #   + ~3 live f32 intermediates in the kernel body.
    bytes_per_elem = 4 * itemsize + 12
    sub = _sublane_multiple(itemsize)
    max_tile = max(budget // (bytes_per_elem * width), sub)
    tile = int(min(1024, max_tile))
    if rows <= tile:
        return rows                      # single full-extent block (always legal)
    return max((tile // sub) * sub, sub)


def _layernorm_kernel(x_ref, scale_ref, shift_ref, o_ref, *, eps, seg, d):
    x = x_ref[...].astype(jnp.float32)            # (T, seg*d), lane-dense slab
    scale = scale_ref[...].astype(jnp.float32)    # (1, d)
    shift = shift_ref[...].astype(jnp.float32)    # (1, d)

    def normalize(xs):                            # xs: (T, d) -> one original row
        # One-pass stats: var = E[x^2] - mean^2 (PyTorch unbiased=False).
        mean = jnp.mean(xs, axis=-1, keepdims=True)
        mean_sq = jnp.mean(xs * xs, axis=-1, keepdims=True)
        var = jnp.maximum(mean_sq - mean * mean, 0.0)   # clamp rounding noise
        inv_std = jax.lax.rsqrt(var + eps)
        return scale * ((xs - mean) * inv_std) + shift

    if seg == 1:
        out = normalize(x)
    else:
        # Segmented normalization: each d-wide lane segment is one original row.
        out = jnp.concatenate(
            [normalize(x[:, s * d:(s + 1) * d]) for s in range(seg)], axis=-1)
    o_ref[...] = out.astype(o_ref.dtype)


def _layernorm_2d(x2, scale, shift, eps, tile_rows, seg, d, itemsize,
                  budget, vmem_limit):
    rows, width = x2.shape
    sub = _sublane_multiple(itemsize)

    if tile_rows is None:
        tile_rows = _pick_tile_rows(rows, width, itemsize, budget)
    else:
        tile_rows = max(int(tile_rows), 1)
        if tile_rows < rows:
            tile_rows = max((tile_rows // sub) * sub, sub)
        tile_rows = min(tile_rows, rows)

    grid = (pl.cdiv(rows, tile_rows),)   # ragged last block writeback is masked

    out = pl.pallas_call(
        functools.partial(_layernorm_kernel, eps=float(eps), seg=seg, d=d),
        out_shape=jax.ShapeDtypeStruct((rows, width), x2.dtype),
        grid_spec=pltpu.PrefetchScalarGridSpec(
            num_scalar_prefetch=0,
            grid=grid,
            in_specs=[
                pl.BlockSpec((tile_rows, width), lambda i: (i, 0)),
                pl.BlockSpec((1, d), lambda i: (0, 0)),
                pl.BlockSpec((1, d), lambda i: (0, 0)),
            ],
            out_specs=pl.BlockSpec((tile_rows, width), lambda i: (i, 0)),
        ),
        compiler_params=pltpu.CompilerParams(
            # Row blocks are independent -> shard across TensorCores on v7x.
            dimension_semantics=("parallel",),
            vmem_limit_bytes=int(vmem_limit),
        ),
    )(x2, scale.reshape(1, d), shift.reshape(1, d))
    return out


def layernorm(x, scale, shift, eps=1e-5, tile_rows=None):
    """x: (..., emb_dim); scale/shift: (emb_dim,). Returns same shape/dtype as x."""
    orig_shape = x.shape
    d = orig_shape[-1]
    rows = 1
    for s in orig_shape[:-1]:
        rows *= s

    itemsize = jnp.dtype(x.dtype).itemsize
    budget, vmem_limit = _vmem_plan()

    # Lane-density fold: pack `seg` consecutive rows into one 128-wide row when
    # D is a small divisor of 128 (free row-major reshape, unmasked vst stores).
    seg = 1
    if 0 < d < 128 and 128 % d == 0 and (128 // d) <= 16 and rows % (128 // d) == 0:
        seg = 128 // d

    if seg > 1:
        try:
            out = _layernorm_2d(x.reshape(rows // seg, seg * d), scale, shift,
                                eps, tile_rows, seg, d, itemsize,
                                budget, vmem_limit)
            return out.reshape(orig_shape)
        except Exception:
            seg = 1   # conservative fallback: plain (masked-store) path

    out = _layernorm_2d(x.reshape(rows, d), scale, shift, eps, tile_rows,
                        1, d, itemsize, budget, vmem_limit)
    return out.reshape(orig_shape)


def _reference(x, scale, shift, eps):
    mean = x.mean(axis=-1, keepdims=True)
    var = ((x - mean) ** 2).mean(axis=-1, keepdims=True)
    return scale * ((x - mean) / jnp.sqrt(var + eps)) + shift


if __name__ == "__main__":
    key = jax.random.PRNGKey(0)

    # Deterministic parameter init (nn.Parameter(torch.ones/zeros(emb_dim))).
    # Case 1: small D=32 -> exercises the lane-dense fold path (seg=4).
    batch, seq, emb_dim = 2, 8, 32
    k1, k2 = jax.random.split(key)
    x1 = jax.random.normal(k1, (batch, seq, emb_dim), dtype=jnp.float32)
    scale1 = jnp.ones((emb_dim,), dtype=jnp.float32)
    shift1 = jnp.zeros((emb_dim,), dtype=jnp.float32)
    out1 = jax.block_until_ready(layernorm(x1, scale1, shift1, eps=1e-5))
    ref1 = _reference(x1, scale1, shift1, 1e-5)
    assert jnp.allclose(out1, ref1, atol=1e-5, rtol=1e-5), "mismatch (D=32)"

    # Case 2: D=256 -> exercises the plain lane-dense path (seg=1).
    emb_dim2 = 256
    x2 = jax.random.normal(k2, (batch, seq, emb_dim2), dtype=jnp.float32)
    scale2 = jnp.ones((emb_dim2,), dtype=jnp.float32)
    shift2 = jnp.zeros((emb_dim2,), dtype=jnp.float32)
    out2 = jax.block_until_ready(layernorm(x2, scale2, shift2, eps=1e-5))
    ref2 = _reference(x2, scale2, shift2, 1e-5)
    assert jnp.allclose(out2, ref2, atol=1e-5, rtol=1e-5), "mismatch (D=256)"

    print("KERNEL_OK")
</pallas_src>

<mosaic_0001>
module attributes {stable_mosaic.version = 11 : i64} {
  func.func @_layernorm_kernel(%arg0: i32, %arg1: memref<4x128xf32, #tpu.memory_space<vmem>>, %arg2: memref<1x32xf32, #tpu.memory_space<vmem>>, %arg3: memref<1x32xf32, #tpu.memory_space<vmem>>, %arg4: memref<4x128xf32, #tpu.memory_space<vmem>>) attributes {dimension_semantics = [#tpu.dimension_semantics<parallel>], iteration_bounds = array<i64: 1>, scalar_prefetch = 0 : i64, scratch_operands = 0 : i64, tpu.core_type = #tpu.core_type<tc>, window_params = [{transform_indices = @transform_0, window_bounds = array<i64: 4, 128>}, {pipeline_mode = #tpu.pipeline_mode<synchronous>, transform_indices = @transform_1, window_bounds = array<i64: 1, 32>}, {pipeline_mode = #tpu.pipeline_mode<synchronous>, transform_indices = @transform_2, window_bounds = array<i64: 1, 32>}, {transform_indices = @transform_3, window_bounds = array<i64: 4, 128>}]} {
    %c0 = arith.constant 0 : index
    %c0_0 = arith.constant 0 : index
    %0 = vector.load %arg1[%c0, %c0_0] : memref<4x128xf32, #tpu.memory_space<vmem>>, vector<4x128xf32>
    %c0_1 = arith.constant 0 : index
    %c0_2 = arith.constant 0 : index
    %1 = vector.load %arg2[%c0_1, %c0_2] : memref<1x32xf32, #tpu.memory_space<vmem>>, vector<1x32xf32>
    %c0_3 = arith.constant 0 : index
    %c0_4 = arith.constant 0 : index
    %2 = vector.load %arg3[%c0_3, %c0_4] : memref<1x32xf32, #tpu.memory_space<vmem>>, vector<1x32xf32>
    %3 = vector.extract_strided_slice %0 {offsets = [0, 0], sizes = [4, 32], strides = [1, 1]} : vector<4x128xf32> to vector<4x32xf32>
    %cst = arith.constant dense<0.000000e+00> : vector<4xf32>
    %4 = vector.multi_reduction <add>, %3, %cst [1] : vector<4x32xf32> to vector<4xf32>
    %5 = vector.shape_cast %4 : vector<4xf32> to vector<4x1xf32>
    %cst_5 = arith.constant 3.200000e+01 : f32
    %6 = vector.broadcast %cst_5 : f32 to vector<4x1xf32>
    %7 = arith.divf %5, %6 : vector<4x1xf32>
    %8 = arith.mulf %3, %3 : vector<4x32xf32>
    %cst_6 = arith.constant dense<0.000000e+00> : vector<4xf32>
    %9 = vector.multi_reduction <add>, %8, %cst_6 [1] : vector<4x32xf32> to vector<4xf32>
    %10 = vector.shape_cast %9 : vector<4xf32> to vector<4x1xf32>
    %cst_7 = arith.constant 3.200000e+01 : f32
    %11 = vector.broadcast %cst_7 : f32 to vector<4x1xf32>
    %12 = arith.divf %10, %11 : vector<4x1xf32>
    %13 = arith.mulf %7, %7 : vector<4x1xf32>
    %14 = arith.subf %12, %13 : vector<4x1xf32>
    %cst_8 = arith.constant 0.000000e+00 : f32
    %15 = vector.broadcast %cst_8 : f32 to vector<4x1xf32>
    %16 = arith.maximumf %14, %15 : vector<4x1xf32>
    %cst_9 = arith.constant 9.99999974E-6 : f32
    %17 = vector.broadcast %cst_9 : f32 to vector<4x1xf32>
    %18 = arith.addf %16, %17 : vector<4x1xf32>
    %19 = math.rsqrt %18 : vector<4x1xf32>
    %20 = vector.broadcast %7 : vector<4x1xf32> to vector<4x32xf32>
    %21 = arith.subf %3, %20 : vector<4x32xf32>
    %22 = vector.broadcast %19 : vector<4x1xf32> to vector<4x32xf32>
    %23 = arith.mulf %21, %22 : vector<4x32xf32>
    %24 = vector.broadcast %1 : vector<1x32xf32> to vector<4x32xf32>
    %25 = arith.mulf %24, %23 : vector<4x32xf32>
    %26 = vector.broadcast %2 : vector<1x32xf32> to vector<4x32xf32>
    %27 = arith.addf %25, %26 : vector<4x32xf32>
    %28 = vector.extract_strided_slice %0 {offsets = [0, 32], sizes = [4, 32], strides = [1, 1]} : vector<4x128xf32> to vector<4x32xf32>
    %cst_10 = arith.constant dense<0.000000e+00> : vector<4xf32>
    %29 = vector.multi_reduction <add>, %28, %cst_10 [1] : vector<4x32xf32> to vector<4xf32>
    %30 = vector.shape_cast %29 : vector<4xf32> to vector<4x1xf32>
    %cst_11 = arith.constant 3.200000e+01 : f32
    %31 = vector.broadcast %cst_11 : f32 to vector<4x1xf32>
    %32 = arith.divf %30, %31 : vector<4x1xf32>
    %33 = arith.mulf %28, %28 : vector<4x32xf32>
    %cst_12 = arith.constant dense<0.000000e+00> : vector<4xf32>
    %34 = vector.multi_reduction <add>, %33, %cst_12 [1] : vector<4x32xf32> to vector<4xf32>
    %35 = vector.shape_cast %34 : vector<4xf32> to vector<4x1xf32>
    %cst_13 = arith.constant 3.200000e+01 : f32
    %36 = vector.broadcast %cst_13 : f32 to vector<4x1xf32>
    %37 = arith.divf %35, %36 : vector<4x1xf32>
    %38 = arith.mulf %32, %32 : vector<4x1xf32>
    %39 = arith.subf %37, %38 : vector<4x1xf32>
    %cst_14 = arith.constant 0.000000e+00 : f32
    %40 = vector.broadcast %cst_14 : f32 to vector<4x1xf32>
    %41 = arith.maximumf %39, %40 : vector<4x1xf32>
    %cst_15 = arith.constant 9.99999974E-6 : f32
    %42 = vector.broadcast %cst_15 : f32 to vector<4x1xf32>
    %43 = arith.addf %41, %42 : vector<4x1xf32>
    %44 = math.rsqrt %43 : vector<4x1xf32>
    %45 = vector.broadcast %32 : vector<4x1xf32> to vector<4x32xf32>
    %46 = arith.subf %28, %45 : vector<4x32xf32>
    %47 = vector.broadcast %44 : vector<4x1xf32> to vector<4x32xf32>
    %48 = arith.mulf %46, %47 : vector<4x32xf32>
    %49 = vector.broadcast %1 : vector<1x32xf32> to vector<4x32xf32>
    %50 = arith.mulf %49, %48 : vector<4x32xf32>
    %51 = vector.broadcast %2 : vector<1x32xf32> to vector<4x32xf32>
    %52 = arith.addf %50, %51 : vector<4x32xf32>
    %53 = vector.extract_strided_slice %0 {offsets = [0, 64], sizes = [4, 32], strides = [1, 1]} : vector<4x128xf32> to vector<4x32xf32>
    %cst_16 = arith.constant dense<0.000000e+00> : vector<4xf32>
    %54 = vector.multi_reduction <add>, %53, %cst_16 [1] : vector<4x32xf32> to vector<4xf32>
    %55 = vector.shape_cast %54 : vector<4xf32> to vector<4x1xf32>
    %cst_17 = arith.constant 3.200000e+01 : f32
    %56 = vector.broadcast %cst_17 : f32 to vector<4x1xf32>
    %57 = arith.divf %55, %56 : vector<4x1xf32>
    %58 = arith.mulf %53, %53 : vector<4x32xf32>
    %cst_18 = arith.constant dense<0.000000e+00> : vector<4xf32>
    %59 = vector.multi_reduction <add>, %58, %cst_18 [1] : vector<4x32xf32> to vector<4xf32>
    %60 = vector.shape_cast %59 : vector<4xf32> to vector<4x1xf32>
    %cst_19 = arith.constant 3.200000e+01 : f32
    %61 = vector.broadcast %cst_19 : f32 to vector<4x1xf32>
    %62 = arith.divf %60, %61 : vector<4x1xf32>
    %63 = arith.mulf %57, %57 : vector<4x1xf32>
    %64 = arith.subf %62, %63 : vector<4x1xf32>
    %cst_20 = arith.constant 0.000000e+00 : f32
    %65 = vector.broadcast %cst_20 : f32 to vector<4x1xf32>
    %66 = arith.maximumf %64, %65 : vector<4x1xf32>
    %cst_21 = arith.constant 9.99999974E-6 : f32
    %67 = vector.broadcast %cst_21 : f32 to vector<4x1xf32>
    %68 = arith.addf %66, %67 : vector<4x1xf32>
    %69 = math.rsqrt %68 : vector<4x1xf32>
    %70 = vector.broadcast %57 : vector<4x1xf32> to vector<4x32xf32>
    %71 = arith.subf %53, %70 : vector<4x32xf32>
    %72 = vector.broadcast %69 : vector<4x1xf32> to vector<4x32xf32>
    %73 = arith.mulf %71, %72 : vector<4x32xf32>
    %74 = vector.broadcast %1 : vector<1x32xf32> to vector<4x32xf32>
    %75 = arith.mulf %74, %73 : vector<4x32xf32>
    %76 = vector.broadcast %2 : vector<1x32xf32> to vector<4x32xf32>
    %77 = arith.addf %75, %76 : vector<4x32xf32>
    %78 = vector.extract_strided_slice %0 {offsets = [0, 96], sizes = [4, 32], strides = [1, 1]} : vector<4x128xf32> to vector<4x32xf32>
    %cst_22 = arith.constant dense<0.000000e+00> : vector<4xf32>
    %79 = vector.multi_reduction <add>, %78, %cst_22 [1] : vector<4x32xf32> to vector<4xf32>
    %80 = vector.shape_cast %79 : vector<4xf32> to vector<4x1xf32>
    %cst_23 = arith.constant 3.200000e+01 : f32
    %81 = vector.broadcast %cst_23 : f32 to vector<4x1xf32>
    %82 = arith.divf %80, %81 : vector<4x1xf32>
    %83 = arith.mulf %78, %78 : vector<4x32xf32>
    %cst_24 = arith.constant dense<0.000000e+00> : vector<4xf32>
    %84 = vector.multi_reduction <add>, %83, %cst_24 [1] : vector<4x32xf32> to vector<4xf32>
    %85 = vector.shape_cast %84 : vector<4xf32> to vector<4x1xf32>
    %cst_25 = arith.constant 3.200000e+01 : f32
    %86 = vector.broadcast %cst_25 : f32 to vector<4x1xf32>
    %87 = arith.divf %85, %86 : vector<4x1xf32>
    %88 = arith.mulf %82, %82 : vector<4x1xf32>
    %89 = arith.subf %87, %88 : vector<4x1xf32>
    %cst_26 = arith.constant 0.000000e+00 : f32
    %90 = vector.broadcast %cst_26 : f32 to vector<4x1xf32>
    %91 = arith.maximumf %89, %90 : vector<4x1xf32>
    %cst_27 = arith.constant 9.99999974E-6 : f32
    %92 = vector.broadcast %cst_27 : f32 to vector<4x1xf32>
    %93 = arith.addf %91, %92 : vector<4x1xf32>
    %94 = math.rsqrt %93 : vector<4x1xf32>
    %95 = vector.broadcast %82 : vector<4x1xf32> to vector<4x32xf32>
    %96 = arith.subf %78, %95 : vector<4x32xf32>
    %97 = vector.broadcast %94 : vector<4x1xf32> to vector<4x32xf32>
    %98 = arith.mulf %96, %97 : vector<4x32xf32>
    %99 = vector.broadcast %1 : vector<1x32xf32> to vector<4x32xf32>
    %100 = arith.mulf %99, %98 : vector<4x32xf32>
    %101 = vector.broadcast %2 : vector<1x32xf32> to vector<4x32xf32>
    %102 = arith.addf %100, %101 : vector<4x32xf32>
    %103 = tpu.concatenate %27, %52, %77, %102 in 1 : vector<4x32xf32>, vector<4x32xf32>, vector<4x32xf32>, vector<4x32xf32> -> vector<4x128xf32>
    %c0_28 = arith.constant 0 : index
    %c0_29 = arith.constant 0 : index
    %104 = vector.load %arg4[%c0_28, %c0_29] : memref<4x128xf32, #tpu.memory_space<vmem>>, vector<4x128xf32>
    tpu.vector_store %arg4[%c0_28, %c0_29], %103 {strides = array<i32>} : memref<4x128xf32, #tpu.memory_space<vmem>>, vector<4x128xf32>,
    return
  }
  func.func @transform_0(%arg0: i32) -> (i32, i32) {
    %c0_i32 = arith.constant 0 : i32
    %c0_i32_0 = arith.constant 0 : i32
    return %arg0, %c0_i32 : i32, i32
  }
  func.func @transform_1(%arg0: i32) -> (i32, i32) {
    %c0_i32 = arith.constant 0 : i32
    %c0_i32_0 = arith.constant 0 : i32
    %c0_i32_1 = arith.constant 0 : i32
    return %c0_i32, %c0_i32_0 : i32, i32
  }
  func.func @transform_2(%arg0: i32) -> (i32, i32) {
    %c0_i32 = arith.constant 0 : i32
    %c0_i32_0 = arith.constant 0 : i32
    %c0_i32_1 = arith.constant 0 : i32
    return %c0_i32, %c0_i32_0 : i32, i32
  }
  func.func @transform_3(%arg0: i32) -> (i32, i32) {
    %c0_i32 = arith.constant 0 : i32
    %c0_i32_0 = arith.constant 0 : i32
    return %arg0, %c0_i32 : i32, i32
  }
}

module attributes {stable_mosaic.version = 11 : i64} {
  func.func @_layernorm_kernel(%arg0: i32, %arg1: memref<16x32xf32, #tpu.memory_space<vmem>>, %arg2: memref<1x32xf32, #tpu.memory_space<vmem>>, %arg3: memref<1x32xf32, #tpu.memory_space<vmem>>, %arg4: memref<16x32xf32, #tpu.memory_space<vmem>>) attributes {dimension_semantics = [#tpu.dimension_semantics<parallel>], iteration_bounds = array<i64: 1>, scalar_prefetch = 0 : i64, scratch_operands = 0 : i64, tpu.core_type = #tpu.core_type<tc>, window_params = [{transform_indices = @transform_0, window_bounds = array<i64: 16, 32>}, {pipeline_mode = #tpu.pipeline_mode<synchronous>, transform_indices = @transform_1, window_bounds = array<i64: 1, 32>}, {pipeline_mode = #tpu.pipeline_mode<synchronous>, transform_indices = @transform_2, window_bounds = array<i64: 1, 32>}, {transform_indices = @transform_3, window_bounds = array<i64: 16, 32>}]} {
    %c0 = arith.constant 0 : index
    %c0_0 = arith.constant 0 : index
    %0 = vector.load %arg1[%c0, %c0_0] : memref<16x32xf32, #tpu.memory_space<vmem>>, vector<16x32xf32>
    %c0_1 = arith.constant 0 : index
    %c0_2 = arith.constant 0 : index
    %1 = vector.load %arg2[%c0_1, %c0_2] : memref<1x32xf32, #tpu.memory_space<vmem>>, vector<1x32xf32>
    %c0_3 = arith.constant 0 : index
    %c0_4 = arith.constant 0 : index
    %2 = vector.load %arg3[%c0_3, %c0_4] : memref<1x32xf32, #tpu.memory_space<vmem>>, vector<1x32xf32>
    %cst = arith.constant dense<0.000000e+00> : vector<16xf32>
    %3 = vector.multi_reduction <add>, %0, %cst [1] : vector<16x32xf32> to vector<16xf32>
    %4 = vector.shape_cast %3 : vector<16xf32> to vector<16x1xf32>
    %cst_5 = arith.constant 3.200000e+01 : f32
    %5 = vector.broadcast %cst_5 : f32 to vector<16x1xf32>
    %6 = arith.divf %4, %5 : vector<16x1xf32>
    %7 = arith.mulf %0, %0 : vector<16x32xf32>
    %cst_6 = arith.constant dense<0.000000e+00> : vector<16xf32>
    %8 = vector.multi_reduction <add>, %7, %cst_6 [1] : vector<16x32xf32> to vector<16xf32>
    %9 = vector.shape_cast %8 : vector<16xf32> to vector<16x1xf32>
    %cst_7 = arith.constant 3.200000e+01 : f32
    %10 = vector.broadcast %cst_7 : f32 to vector<16x1xf32>
    %11 = arith.divf %9, %10 : vector<16x1xf32>
    %12 = arith.mulf %6, %6 : vector<16x1xf32>
    %13 = arith.subf %11, %12 : vector<16x1xf32>
    %cst_8 = arith.constant 0.000000e+00 : f32
    %14 = vector.broadcast %cst_8 : f32 to vector<16x1xf32>
    %15 = arith.maximumf %13, %14 : vector<16x1xf32>
    %cst_9 = arith.constant 9.99999974E-6 : f32
    %16 = vector.broadcast %cst_9 : f32 to vector<16x1xf32>
    %17 = arith.addf %15, %16 : vector<16x1xf32>
    %18 = math.rsqrt %17 : vector<16x1xf32>
    %19 = vector.broadcast %6 : vector<16x1xf32> to vector<16x32xf32>
    %20 = arith.subf %0, %19 : vector<16x32xf32>
    %21 = vector.broadcast %18 : vector<16x1xf32> to vector<16x32xf32>
    %22 = arith.mulf %20, %21 : vector<16x32xf32>
    %23 = vector.broadcast %1 : vector<1x32xf32> to vector<16x32xf32>
    %24 = arith.mulf %23, %22 : vector<16x32xf32>
    %25 = vector.broadcast %2 : vector<1x32xf32> to vector<16x32xf32>
    %26 = arith.addf %24, %25 : vector<16x32xf32>
    %c0_10 = arith.constant 0 : index
    %c0_11 = arith.constant 0 : index
    %27 = vector.load %arg4[%c0_10, %c0_11] : memref<16x32xf32, #tpu.memory_space<vmem>>, vector<16x32xf32>
    tpu.vector_store %arg4[%c0_10, %c0_11], %26 {strides = array<i32>} : memref<16x32xf32, #tpu.memory_space<vmem>>, vector<16x32xf32>,
    return
  }
  func.func @transform_0(%arg0: i32) -> (i32, i32) {
    %c0_i32 = arith.constant 0 : i32
    %c0_i32_0 = arith.constant 0 : i32
    return %arg0, %c0_i32 : i32, i32
  }
  func.func @transform_1(%arg0: i32) -> (i32, i32) {
    %c0_i32 = arith.constant 0 : i32
    %c0_i32_0 = arith.constant 0 : i32
    %c0_i32_1 = arith.constant 0 : i32
    return %c0_i32, %c0_i32_0 : i32, i32
  }
  func.func @transform_2(%arg0: i32) -> (i32, i32) {
    %c0_i32 = arith.constant 0 : i32
    %c0_i32_0 = arith.constant 0 : i32
    %c0_i32_1 = arith.constant 0 : i32
    return %c0_i32, %c0_i32_0 : i32, i32
  }
  func.func @transform_3(%arg0: i32) -> (i32, i32) {
    %c0_i32 = arith.constant 0 : i32
    %c0_i32_0 = arith.constant 0 : i32
    return %arg0, %c0_i32 : i32, i32
  }
}

</mosaic_0001>

<llo_original>
// kernel: tpu_custom_call.1
$region0: #{tpu_custom_call.1}
  #allocation0 [shape = 'u32[]', space=smem, size = 0x4, offset = 0x4, fixed_abs, tag = 'smem constant byte address 0x4 - core index']
  #allocation1 [shape = 'u32[144,128]{1,0:T(1,128)}', space=vmem, size = 0x12000, scoped, tag = 'internal scratch']
  %s0 = inlined_call_operand.hbm [shape: f32[4,128], index: 0, kind: input, shape index: {}]
  %s1 = inlined_call_operand.vmem [shape: f32[1,32], index: 1, kind: input, shape index: {}]
  %s2 = inlined_call_operand.vmem [shape: f32[1,32], index: 2, kind: input, shape index: {}]
  %s3 = inlined_call_operand.hbm [shape: f32[4,128], index: 3, kind: output, shape index: {}]
  %s4 = sld [smem:[#allocation0]]
  $region26: #{tpu_custom_call.1} parent=0
    _
  %s6 = ssub.s32 1, %s4
  %s7 = scalar_select 0, %s6, %s4
  $region1: #{tpu_custom_call.1} parent=0
    #allocation2 [shape = 'u8[2048]{0}', space=vmem, size = 0x800, scoped, tag = 'input window, operand 0, single buffered']
    #allocation3 [shape = 's32[1]{0}', space=sflag, size = 0x4, scoped, tag = 'scoped memory for tpu_custom_call.1']
    #allocation4 [shape = 's32[1]{0}', space=sflag, size = 0x4, scoped, tag = 'scoped memory for tpu_custom_call.1']
    #allocation5 [shape = 'u8[2048]{0}', space=vmem, size = 0x800, scoped, tag = 'output window, operand 0, single buffered']
    %8 = vsyncpa [#allocation3], 0
    %9 = vsyncpa [#allocation4], 0
    // Predicated region
    $region2: #{tpu_custom_call.1} parent=1 // pred_check
      _
    $region3: #{tpu_custom_call.1} parent=1 // pred_check_branch
      %11 = sbr.rel (0) target = $region5
    $region4: #{tpu_custom_call.1} parent=1 // pred_region
      %s13 = ssub.s32 64, 64
      %14 = vsyncadd [#allocation3], %s13
      %s16 = sshll.u32 [#allocation2], 4
      %s17 = int_to_ptr.vmem [resolvable:$true] %s16
      %19 = dma.hbm_to_vmem [thread:$0]  %s0, 64, %s17, [#allocation3]
    $region5: #{tpu_custom_call.1} parent=1 // pred_fallthru
      _
    // Predicated region
    $region6: #{tpu_custom_call.1} parent=1 // pred_check
      _
    $region7: #{tpu_custom_call.1} parent=1 // pred_check_branch
      %21 = sbr.rel (0) target = $region9
    $region8: #{tpu_custom_call.1} parent=1 // pred_region
      _
    $region9: #{tpu_custom_call.1} parent=1 // pred_fallthru
      _
    // Predicated region
    $region10: #{tpu_custom_call.1} parent=1 // pred_check
      _
    $region11: #{tpu_custom_call.1} parent=1 // pred_check_branch
      %23 = sbr.rel (0) target = $region13
    $region12: #{tpu_custom_call.1} parent=1 // pred_region
      _
    $region13: #{tpu_custom_call.1} parent=1 // pred_fallthru
      _
    // Predicated region
    $region14: #{tpu_custom_call.1} parent=1 // pred_check
      _
    $region15: #{tpu_custom_call.1} parent=1 // pred_check_branch
      %25 = sbr.rel (0) target = $region17
    $region16: #{tpu_custom_call.1} parent=1 // pred_region
      %26 = dma.done [#allocation3], 64
    $region17: #{tpu_custom_call.1} parent=1 // pred_fallthru
      _
    %v27 = vld [vmem:[#allocation2] sm:$0xf]
    %v28 = vld [vmem:[%s1] sm:$0x1]
    %v29 = vld [vmem:[%s2] sm:$0x1]
    %vm30 = vcmask 257024
    %v31 = vsel %vm30, %v27, 0.0
    %32 = vadd.xlane.f32.xlu0 %v31
    %v33 = vpop.xlane.xlu0 %32
    %v34 = vrcp.pop 32.0
    %v35 = vmul.f32 %v33, %v34
    %v36 = vmul.f32 %v27, %v27
    %v37 = vsel %vm30, %v36, 0.0
    %38 = vadd.xlane.f32.xlu0 %v37
    %v39 = vpop.xlane.xlu0 %38
    %v40 = vmul.f32 %v39, %v34
    %v41 = vmul.f32 %v35, %v35
    %v42 = vsub.f32 %v40, %v41
    %v43 = vmax.f32 %v42, 0.0
    %v44 = vadd.f32 %v43, 1e-05
    %v45 = vrsqrt.pop %v44
    %v46 = vsub.f32 %v27, %v35
    %v47 = vmul.f32 %v46, %v45
    %v49 = vlaneseq
    %v50 = vshrl.u32 %v49, 7
    %v51 = vsub.s32 0, %v50
    %v52 = vrot.slane %v28, %v51
    %v54 = vmul.f32 %v52, %v47
    %v56 = vlaneseq
    %v57 = vshrl.u32 %v56, 7
    %v58 = vsub.s32 0, %v57
    %v59 = vrot.slane %v29, %v58
    %v61 = vadd.f32 %v54, %v59
    %63 = vrot.lane.b32.xlu0 %v27, 96
    %v64 = vpop.permute.xlu0 %63
    %v66 = vsel %vm30, %v64, 0.0
    %67 = vadd.xlane.f32.xlu0 %v66
    %v68 = vpop.xlane.xlu0 %67
    %v69 = vmul.f32 %v68, %v34
    %71 = vrot.lane.b32.xlu0 %v36, 96
    %v72 = vpop.permute.xlu0 %71
    %v74 = vsel %vm30, %v72, 0.0
    %75 = vadd.xlane.f32.xlu0 %v74
    %v76 = vpop.xlane.xlu0 %75
    %v77 = vmul.f32 %v76, %v34
    %v78 = vmul.f32 %v69, %v69
    %v79 = vsub.f32 %v77, %v78
    %v80 = vmax.f32 %v79, 0.0
    %v81 = vadd.f32 %v80, 1e-05
    %v82 = vrsqrt.pop %v81
    %v83 = vsub.f32 %v27, %v69
    %v84 = vmul.f32 %v83, %v82
    %86 = vrot.lane.b32.xlu0 %v84, 96
    %v87 = vpop.permute.xlu0 %86
    %v89 = vmul.f32 %v52, %v87
    %v90 = vadd.f32 %v89, %v59
    %91 = vrot.lane.b32.xlu0 %v27, 64
    %v92 = vpop.permute.xlu0 %91
    %v94 = vsel %vm30, %v92, 0.0
    %95 = vadd.xlane.f32.xlu0 %v94
    %v96 = vpop.xlane.xlu0 %95
    %v97 = vmul.f32 %v96, %v34
    %98 = vrot.lane.b32.xlu0 %v36, 64
    %v99 = vpop.permute.xlu0 %98
    %v101 = vsel %vm30, %v99, 0.0
    %102 = vadd.xlane.f32.xlu0 %v101
    %v103 = vpop.xlane.xlu0 %102
    %v104 = vmul.f32 %v103, %v34
    %v105 = vmul.f32 %v97, %v97
    %v106 = vsub.f32 %v104, %v105
    %v107 = vmax.f32 %v106, 0.0
    %v108 = vadd.f32 %v107, 1e-05
    %v109 = vrsqrt.pop %v108
    %v110 = vsub.f32 %v27, %v97
    %v111 = vmul.f32 %v110, %v109
    %113 = vrot.lane.b32.xlu0 %v111, 64
    %v114 = vpop.permute.xlu0 %113
    %v116 = vmul.f32 %v52, %v114
    %v117 = vadd.f32 %v116, %v59
    %118 = vrot.lane.b32.xlu0 %v27, 32
    %v119 = vpop.permute.xlu0 %118
    %v121 = vsel %vm30, %v119, 0.0
    %122 = vadd.xlane.f32.xlu0 %v121
    %v123 = vpop.xlane.xlu0 %122
    %v124 = vmul.f32 %v123, %v34
    %125 = vrot.lane.b32.xlu0 %v36, 32
    %v126 = vpop.permute.xlu0 %125
    %v128 = vsel %vm30, %v126, 0.0
    %129 = vadd.xlane.f32.xlu0 %v128
    %v130 = vpop.xlane.xlu0 %129
    %v131 = vmul.f32 %v130, %v34
    %v132 = vmul.f32 %v124, %v124
    %v133 = vsub.f32 %v131, %v132
    %v134 = vmax.f32 %v133, 0.0
    %v135 = vadd.f32 %v134, 1e-05
    %v136 = vrsqrt.pop %v135
    %v137 = vsub.f32 %v27, %v124
    %v138 = vmul.f32 %v137, %v136
    %140 = vrot.lane.b32.xlu0 %v138, 32
    %v141 = vpop.permute.xlu0 %140
    %v143 = vmul.f32 %v52, %v141
    %v144 = vadd.f32 %v143, %v59
    %146 = vrot.lane.b32.xlu0 %v90, 32
    %v147 = vpop.permute.xlu0 %146
    %150 = vrot.lane.b32.xlu0 %v117, 64
    %v151 = vpop.permute.xlu0 %150
    %154 = vrot.lane.b32.xlu0 %v144, 96
    %v155 = vpop.permute.xlu0 %154
    %vm157 = vcmask 261120
    %v158 = vsel %vm157, %v61, %v147
    %vm159 = vcmask 523264
    %v160 = vsel %vm159, %v158, %v151
    %vm161 = vcmask 785408
    %v162 = vsel %vm161, %v160, %v155
    %163 = vst [vmem:[#allocation5] sm:$0xf] %v162
    // Predicated region
    $region18: #{tpu_custom_call.1} parent=1 // pred_check
      _
    $region19: #{tpu_custom_call.1} parent=1 // pred_check_branch
      %165 = sbr.rel (0) target = $region21
    $region20: #{tpu_custom_call.1} parent=1 // pred_region
      %s167 = ssub.s32 64, 64
      %168 = vsyncadd [#allocation4], %s167
      %s170 = sshll.u32 [#allocation5], 4
      %s171 = int_to_ptr.vmem [resolvable:$true] %s170
      %173 = dma.vmem_to_hbm [thread:$0]  %s171, 64, %s3, [#allocation4]
    $region21: #{tpu_custom_call.1} parent=1 // pred_fallthru
      _
    // Predicated region
    $region22: #{tpu_custom_call.1} parent=1 // pred_check
      _
    $region23: #{tpu_custom_call.1} parent=1 // pred_check_branch
      %175 = sbr.rel (0) target = $region25
    $region24: #{tpu_custom_call.1} parent=1 // pred_region
      %176 = dma.done [#allocation4], 64
    $region25: #{tpu_custom_call.1} parent=1 // pred_fallthru
      _
    %177 = vsyncpa [#allocation3], 1
    %178 = vsyncpa [#allocation4], 1

// kernel: tpu_custom_call.1
$region0: #{tpu_custom_call.1}
  #allocation0 [shape = 'u32[]', space=smem, size = 0x4, offset = 0x4, fixed_abs, tag = 'smem constant byte address 0x4 - core index']
  #allocation1 [shape = 'u32[144,128]{1,0:T(1,128)}', space=vmem, size = 0x12000, scoped, tag = 'internal scratch']
  %s0 = inlined_call_operand.hbm [shape: f32[16,32], index: 0, kind: input, shape index: {}]
  %s1 = inlined_call_operand.vmem [shape: f32[1,32], index: 1, kind: input, shape index: {}]
  %s2 = inlined_call_operand.vmem [shape: f32[1,32], index: 2, kind: input, shape index: {}]
  %s3 = inlined_call_operand.hbm [shape: f32[16,32], index: 3, kind: output, shape index: {}]
  %s4 = sld [smem:[#allocation0]]
  $region26: #{tpu_custom_call.1} parent=0
    _
  %s6 = ssub.s32 1, %s4
  %s7 = scalar_select 0, %s6, %s4
  $region1: #{tpu_custom_call.1} parent=0
    #allocation2 [shape = 'u8[8192]{0}', space=vmem, size = 0x2000, scoped, tag = 'input window, operand 0, single buffered']
    #allocation3 [shape = 's32[1]{0}', space=sflag, size = 0x4, scoped, tag = 'scoped memory for tpu_custom_call.1']
    #allocation4 [shape = 's32[1]{0}', space=sflag, size = 0x4, scoped, tag = 'scoped memory for tpu_custom_call.1']
    #allocation5 [shape = 'u8[8192]{0}', space=vmem, size = 0x2000, scoped, tag = 'output window, operand 0, single buffered']
    %8 = vsyncpa [#allocation3], 0
    %9 = vsyncpa [#allocation4], 0
    // Predicated region
    $region2: #{tpu_custom_call.1} parent=1 // pred_check
      _
    $region3: #{tpu_custom_call.1} parent=1 // pred_check_branch
      %11 = sbr.rel (0) target = $region5
    $region4: #{tpu_custom_call.1} parent=1 // pred_region
      %s13 = ssub.s32 256, 256
      %14 = vsyncadd [#allocation3], %s13
      %s15 = sshll.u32 [#allocation2], 4
      %s16 = int_to_ptr.vmem [resolvable:$true] %s15
      %21 = dma.hbm_to_vmem [thread:$0]  %s0, 256, %s16, [#allocation3], 128, 128, 8
    $region5: #{tpu_custom_call.1} parent=1 // pred_fallthru
      _
    // Predicated region
    $region6: #{tpu_custom_call.1} parent=1 // pred_check
      _
    $region7: #{tpu_custom_call.1} parent=1 // pred_check_branch
      %23 = sbr.rel (0) target = $region9
    $region8: #{tpu_custom_call.1} parent=1 // pred_region
      _
    $region9: #{tpu_custom_call.1} parent=1 // pred_fallthru
      _
    // Predicated region
    $region10: #{tpu_custom_call.1} parent=1 // pred_check
      _
    $region11: #{tpu_custom_call.1} parent=1 // pred_check_branch
      %25 = sbr.rel (0) target = $region13
    $region12: #{tpu_custom_call.1} parent=1 // pred_region
      _
    $region13: #{tpu_custom_call.1} parent=1 // pred_fallthru
      _
    // Predicated region
    $region14: #{tpu_custom_call.1} parent=1 // pred_check
      _
    $region15: #{tpu_custom_call.1} parent=1 // pred_check_branch
      %27 = sbr.rel (0) target = $region17
    $region16: #{tpu_custom_call.1} parent=1 // pred_region
      %28 = dma.done [#allocation3], 256
    $region17: #{tpu_custom_call.1} parent=1 // pred_fallthru
      _
    %v29 = vld [vmem:[#allocation2] sm:$0xff]
    %v30 = vld [vmem:[#allocation2 + $0x8] sm:$0xff]
    %v31 = vld [vmem:[%s1] sm:$0x1]
    %v32 = vld [vmem:[%s2] sm:$0x1]
    %vm33 = vcmask 261120
    %v34 = vsel %vm33, %v29, 0.0
    %35 = vadd.xlane.f32.xlu0 %v34
    %v36 = vpop.xlane.xlu0 %35
    %v37 = vsel %vm33, %v30, 0.0
    %38 = vadd.xlane.f32.xlu0 %v37
    %v39 = vpop.xlane.xlu0 %38
    %v40 = vrcp.pop 32.0
    %v41 = vmul.f32 %v36, %v40
    %v42 = vmul.f32 %v39, %v40
    %v43 = vmul.f32 %v29, %v29
    %v44 = vmul.f32 %v30, %v30
    %v45 = vsel %vm33, %v43, 0.0
    %46 = vadd.xlane.f32.xlu0 %v45
    %v47 = vpop.xlane.xlu0 %46
    %v48 = vsel %vm33, %v44, 0.0
    %49 = vadd.xlane.f32.xlu0 %v48
    %v50 = vpop.xlane.xlu0 %49
    %v51 = vmul.f32 %v47, %v40
    %v52 = vmul.f32 %v50, %v40
    %v53 = vmul.f32 %v41, %v41
    %v54 = vmul.f32 %v42, %v42
    %v55 = vsub.f32 %v51, %v53
    %v56 = vsub.f32 %v52, %v54
    %v57 = vmax.f32 %v55, 0.0
    %v58 = vmax.f32 %v56, 0.0
    %v59 = vadd.f32 %v57, 1e-05
    %v60 = vadd.f32 %v58, 1e-05
    %v61 = vrsqrt.pop %v59
    %v62 = vrsqrt.pop %v60
    %v63 = vsub.f32 %v29, %v41
    %v64 = vsub.f32 %v30, %v42
    %v65 = vmul.f32 %v63, %v61
    %v66 = vmul.f32 %v64, %v62
    %v68 = vlaneseq
    %v69 = vshrl.u32 %v68, 7
    %v70 = vsub.s32 0, %v69
    %v71 = vrot.slane %v31, %v70
    %v73 = vmul.f32 %v71, %v65
    %v74 = vmul.f32 %v71, %v66
    %v76 = vlaneseq
    %v77 = vshrl.u32 %v76, 7
    %v78 = vsub.s32 0, %v77
    %v79 = vrot.slane %v32, %v78
    %v81 = vadd.f32 %v73, %v79
    %v82 = vadd.f32 %v74, %v79
    %83 = vst.msk [vmem:[#allocation5] sm:$0xff] %vm33, %v81
    %84 = vst.msk [vmem:[#allocation5 + $0x8] sm:$0xff] %vm33, %v82
    // Predicated region
    $region18: #{tpu_custom_call.1} parent=1 // pred_check
      _
    $region19: #{tpu_custom_call.1} parent=1 // pred_check_branch
      %86 = sbr.rel (0) target = $region21
    $region20: #{tpu_custom_call.1} parent=1 // pred_region
      %s88 = ssub.s32 256, 256
      %89 = vsyncadd [#allocation4], %s88
      %s90 = sshll.u32 [#allocation5], 4
      %s91 = int_to_ptr.vmem [resolvable:$true] %s90
      %96 = dma.vmem_to_hbm [thread:$0]  %s91, 256, %s3, [#allocation4], 128, 128, 8
    $region21: #{tpu_custom_call.1} parent=1 // pred_fallthru
      _
    // Predicated region
    $region22: #{tpu_custom_call.1} parent=1 // pred_check
      _
    $region23: #{tpu_custom_call.1} parent=1 // pred_check_branch
      %98 = sbr.rel (0) target = $region25
    $region24: #{tpu_custom_call.1} parent=1 // pred_region
      %99 = dma.done [#allocation4], 256
    $region25: #{tpu_custom_call.1} parent=1 // pred_fallthru
      _
    %100 = vsyncpa [#allocation3], 1
    %101 = vsyncpa [#allocation4], 1

</llo_original>
